<compile_context>
chip_gen: v5e
topology: v5e:2x2
jax: 0.10.0
libtpu: 0.0.40
codegen_flags: <defaults>
</compile_context>

<pallas_src>
import functools

import jax
import jax.numpy as jnp
from jax.experimental import pallas as pl
from jax.experimental.pallas import tpu as pltpu


def _round_up(v, m):
    return ((v + m - 1) // m) * m


def _hidden_layer_kernel(x_ref, w_ref, b_ref, o_ref, acc_ref):
    """One (tm, tn) output tile; K streamed along grid axis 2 into acc_ref."""
    k = pl.program_id(2)

    @pl.when(k == 0)
    def _init():
        # Fold the bias into the accumulator init (saves a VPU add + acc read
        # in the finalize epilogue; the init store happens anyway).
        acc_ref[...] = jnp.broadcast_to(
            b_ref[...].astype(jnp.float32), acc_ref.shape
        )

    # MXU partial product; f32 accumulation regardless of operand dtype.
    acc_ref[...] += jnp.dot(
        x_ref[...], w_ref[...], preferred_element_type=jnp.float32
    )

    @pl.when(k == pl.num_programs(2) - 1)
    def _finalize():
        y = acc_ref[...]
        # Numerically stable softplus, kept in f32 (portable: v5e has no bf16 EUP).
        y = jnp.maximum(y, 0.0) + jnp.log1p(jnp.exp(-jnp.abs(y)))
        o_ref[...] = y.astype(o_ref.dtype)


def prepare_hidden_layer_params(weight, bias, *, mxu_dtype=jnp.bfloat16):
    """One-time parameter prep. Call at setup time, NOT per forward pass.

    weight: (out_features, in_features)   -- torch.nn.Linear layout
    bias:   (out_features,)
    Returns (w_p, b_p): weight^T zero-padded to lane-dense multiples of 128 and
    cast to the MXU operand dtype; f32 bias padded to match.
    """
    out_f, in_f = weight.shape
    k_pad = _round_up(in_f, 128)
    n_pad = _round_up(out_f, 128)
    w_p = jnp.pad(weight.T, ((0, k_pad - in_f), (0, n_pad - out_f)))
    if mxu_dtype is not None:
        w_p = w_p.astype(mxu_dtype)
    b_p = jnp.pad(bias.astype(jnp.float32).reshape(1, -1),
                  ((0, 0), (0, n_pad - out_f)))
    return w_p, b_p


def _select_tiles(m, k_pad, n_pad, op_itemsize, out_itemsize):
    """Tiles that fill the MXU, amortize the ~0.35us grid-step overhead, and fit
    the scoped-VMEM budget on every generation (incl. v7x: 64 MiB physical)."""
    tm = min(512, _round_up(m, 8))
    tn = min(512, n_pad)
    # Collapse the K reduction axis whenever the whole K fits; otherwise pick the
    # largest multiple-of-128 tile <= 2048 that divides k_pad exactly (K must be
    # exact -- no partial blocks allowed along the contraction).
    if k_pad <= 2048:
        tk = k_pad
    else:
        g = 16
        while (k_pad // 128) % g != 0:
            g -= 1
        tk = 128 * g

    def footprint(tm_, tn_, tk_):
        return (2 * (tm_ * tk_ + tk_ * tn_) * op_itemsize   # x / W double buffers
                + tm_ * tn_ * 4                              # f32 accumulator
                + 2 * tm_ * tn_ * out_itemsize               # output double buffer
                + 2 * tn_ * 4)                               # bias

    budget = 24 * 1024 * 1024
    while footprint(tm, tn, tk) > budget and tm > 64:
        tm = _round_up(max(tm // 2, 8), 8)

    # v7x has 2 TensorCores; 'parallel' grid axes shard across them. Make sure at
    # least one parallel axis has >= 2 blocks (harmless no-op on v5e/v6e).
    if pl.cdiv(m, tm) * pl.cdiv(n_pad, tn) == 1:
        tm_half = _round_up(max(tm // 2, 8), 8)
        if tm_half < tm and m > tm_half:
            tm = tm_half
    return tm, tn, tk


@functools.partial(
    jax.jit, static_argnames=("out_features", "mxu_dtype", "out_dtype")
)
def hidden_layer(x, w_p, b_p, *, out_features, mxu_dtype=jnp.bfloat16,
                 out_dtype=None):
    """y = softplus(x @ W^T + b), with (w_p, b_p) from prepare_hidden_layer_params.

    x:   (..., in_features)
    w_p: (k_pad, n_pad) padded/cast transposed weight
    b_p: (1, n_pad) f32 bias
    """
    lead = x.shape[:-1]
    in_f = x.shape[-1]
    k_pad, n_pad = w_p.shape
    out_dtype = x.dtype if out_dtype is None else out_dtype

    x2 = x.reshape(-1, in_f)
    m = x2.shape[0]

    if mxu_dtype is not None and x2.dtype != jnp.dtype(mxu_dtype):
        x2 = x2.astype(mxu_dtype)
    if in_f != k_pad:
        # Only the K tail needs exact zeros (keeps the contraction exact); M and
        # the output N edge are handled by Pallas block clipping / masked stores.
        x2 = jnp.pad(x2, ((0, 0), (0, k_pad - in_f)))

    tm, tn, tk = _select_tiles(
        m, k_pad, n_pad,
        jnp.dtype(x2.dtype).itemsize, jnp.dtype(out_dtype).itemsize)

    grid = (pl.cdiv(m, tm), pl.cdiv(n_pad, tn), k_pad // tk)

    cost = pl.CostEstimate(
        flops=2 * m * k_pad * n_pad,
        transcendentals=2 * m * n_pad,  # exp + log1p per output element
        bytes_accessed=(
            x2.size * x2.dtype.itemsize
            + w_p.size * w_p.dtype.itemsize
            + b_p.size * b_p.dtype.itemsize
            + m * out_features * jnp.dtype(out_dtype).itemsize),
    )

    out = pl.pallas_call(
        _hidden_layer_kernel,
        out_shape=jax.ShapeDtypeStruct((m, out_features), out_dtype),
        grid_spec=pltpu.PrefetchScalarGridSpec(
            num_scalar_prefetch=0,
            grid=grid,
            in_specs=[
                pl.BlockSpec((tm, tk), lambda i, j, k: (i, k)),
                pl.BlockSpec((tk, tn), lambda i, j, k: (k, j)),
                pl.BlockSpec((1, tn), lambda i, j, k: (0, j)),
            ],
            out_specs=pl.BlockSpec((tm, tn), lambda i, j, k: (i, j)),
            scratch_shapes=[pltpu.VMEM((tm, tn), jnp.float32)],
        ),
        compiler_params=pltpu.CompilerParams(
            dimension_semantics=("parallel", "parallel", "arbitrary"),
            vmem_limit_bytes=32 * 1024 * 1024,
        ),
        cost_estimate=cost,
    )(x2, w_p, b_p)

    return out.reshape(lead + (out_features,))


def reference(x, weight, bias):
    y = x @ weight.T + bias[None, :]
    return jnp.maximum(y, 0.0) + jnp.log1p(jnp.exp(-jnp.abs(y)))


if __name__ == "__main__":
    key = jax.random.PRNGKey(0)
    kx, kw, kb = jax.random.split(key, 3)

    # Small shapes consistent with the module (a batch of crystal/node features).
    N, in_features, out_features = 16, 32, 64

    x = jax.random.normal(kx, (N, in_features), dtype=jnp.float32)
    # torch.nn.Linear-style params: weight (out_f, in_f), bias (out_f,).
    bound = 1.0 / jnp.sqrt(in_features)
    weight = jax.random.uniform(
        kw, (out_features, in_features), minval=-bound, maxval=bound,
        dtype=jnp.float32)
    bias = jax.random.uniform(
        kb, (out_features,), minval=-bound, maxval=bound, dtype=jnp.float32)

    ref = reference(x, weight, bias)

    # Parameter prep happens ONCE (bf16 default MXU path + f32 exact path).
    w_bf16, b_bf16 = prepare_hidden_layer_params(weight, bias)                    # bf16 operands
    w_f32, b_f32 = prepare_hidden_layer_params(weight, bias, mxu_dtype=None)      # f32 operands

    # 1) Default bf16-MXU path (f32 accumulation + f32 epilogue).
    out = jax.block_until_ready(
        hidden_layer(x, w_bf16, b_bf16, out_features=out_features))
    assert out.shape == (N, out_features)
    assert out.dtype == x.dtype
    assert jnp.allclose(out, ref, atol=3e-2, rtol=3e-2), "bf16 mismatch vs reference"

    # 2) f32-exact path.
    out_f32 = jax.block_until_ready(
        hidden_layer(x, w_f32, b_f32, out_features=out_features, mxu_dtype=None))
    assert jnp.allclose(out_f32, ref, atol=1e-5, rtol=1e-5), "f32 mismatch vs reference"

    # 3) Ragged batch (not a multiple of 8): exercises partial M blocks / masked stores.
    Nr = 13
    out_r = jax.block_until_ready(
        hidden_layer(x[:Nr], w_bf16, b_bf16, out_features=out_features))
    assert out_r.shape == (Nr, out_features)
    assert jnp.allclose(out_r, ref[:Nr], atol=3e-2, rtol=3e-2), "ragged mismatch"

    print("KERNEL_OK")
</pallas_src>

<mosaic_0001>
module attributes {stable_mosaic.version = 11 : i64} {
  func.func @_hidden_layer_kernel(%arg0: i32, %arg1: i32, %arg2: i32, %arg3: memref<8x128xbf16, #tpu.memory_space<vmem>>, %arg4: memref<128x128xbf16, #tpu.memory_space<vmem>>, %arg5: memref<1x128xf32, #tpu.memory_space<vmem>>, %arg6: memref<8x128xf32, #tpu.memory_space<vmem>>, %arg7: memref<8x128xf32, #tpu.memory_space<vmem>>) attributes {dimension_semantics = [#tpu.dimension_semantics<parallel>, #tpu.dimension_semantics<parallel>, #tpu.dimension_semantics<arbitrary>], iteration_bounds = array<i64: 2, 1, 1>, scalar_prefetch = 0 : i64, scratch_operands = 1 : i64, tpu.core_type = #tpu.core_type<tc>, window_params = [{transform_indices = @transform_0, window_bounds = array<i64: 8, 128>}, {transform_indices = @transform_1, window_bounds = array<i64: 128, 128>}, {transform_indices = @transform_2, window_bounds = array<i64: 1, 128>}, {transform_indices = @transform_3, window_bounds = array<i64: 8, 128>}]} {
    %c0_i32 = arith.constant 0 : i32
    %0 = arith.cmpi eq, %arg2, %c0_i32 : i32
    %1 = arith.extui %0 : i1 to i32
    %c0_i32_0 = arith.constant 0 : i32
    %2 = arith.cmpi ne, %1, %c0_i32_0 : i32
    scf.if %2 {
      %c0_10 = arith.constant 0 : index
      %c0_11 = arith.constant 0 : index
      %12 = vector.load %arg5[%c0_10, %c0_11] : memref<1x128xf32, #tpu.memory_space<vmem>>, vector<1x128xf32>
      %13 = vector.shape_cast %12 : vector<1x128xf32> to vector<1x128xf32>
      %14 = vector.broadcast %13 : vector<1x128xf32> to vector<8x128xf32>
      %c0_12 = arith.constant 0 : index
      %c0_13 = arith.constant 0 : index
      %15 = vector.load %arg7[%c0_12, %c0_13] : memref<8x128xf32, #tpu.memory_space<vmem>>, vector<8x128xf32>
      tpu.vector_store %arg7[%c0_12, %c0_13], %14 {strides = array<i32>} : memref<8x128xf32, #tpu.memory_space<vmem>>, vector<8x128xf32>,
    } else {
    }
    %c0 = arith.constant 0 : index
    %c0_1 = arith.constant 0 : index
    %3 = vector.load %arg7[%c0, %c0_1] : memref<8x128xf32, #tpu.memory_space<vmem>>, vector<8x128xf32>
    %c0_2 = arith.constant 0 : index
    %c0_3 = arith.constant 0 : index
    %4 = vector.load %arg3[%c0_2, %c0_3] : memref<8x128xbf16, #tpu.memory_space<vmem>>, vector<8x128xbf16>
    %c0_4 = arith.constant 0 : index
    %c0_5 = arith.constant 0 : index
    %5 = vector.load %arg4[%c0_4, %c0_5] : memref<128x128xbf16, #tpu.memory_space<vmem>>, vector<128x128xbf16>
    %cst = arith.constant dense<0.000000e+00> : vector<8x128xf32>
    %6 = tpu.matmul %4, %5, %cst {dimension_numbers = #tpu.dot_dimension_numbers<[1], [0], [0], [1], [0, 0, 1, 1], [], []>} : vector<8x128xbf16>, vector<128x128xbf16>, vector<8x128xf32> -> vector<8x128xf32>
    %7 = arith.addf %3, %6 : vector<8x128xf32>
    %c0_6 = arith.constant 0 : index
    %c0_7 = arith.constant 0 : index
    %8 = vector.load %arg7[%c0_6, %c0_7] : memref<8x128xf32, #tpu.memory_space<vmem>>, vector<8x128xf32>
    tpu.vector_store %arg7[%c0_6, %c0_7], %7 {strides = array<i32>} : memref<8x128xf32, #tpu.memory_space<vmem>>, vector<8x128xf32>,
    %c0_i32_8 = arith.constant 0 : i32
    %9 = arith.cmpi eq, %arg2, %c0_i32_8 : i32
    %10 = arith.extui %9 : i1 to i32
    %c0_i32_9 = arith.constant 0 : i32
    %11 = arith.cmpi ne, %10, %c0_i32_9 : i32
    scf.if %11 {
      %c0_10 = arith.constant 0 : index
      %c0_11 = arith.constant 0 : index
      %12 = vector.load %arg7[%c0_10, %c0_11] : memref<8x128xf32, #tpu.memory_space<vmem>>, vector<8x128xf32>
      %cst_12 = arith.constant 0.000000e+00 : f32
      %13 = vector.broadcast %cst_12 : f32 to vector<8x128xf32>
      %14 = arith.maximumf %12, %13 : vector<8x128xf32>
      %15 = math.absf %12 : vector<8x128xf32>
      %cst_13 = arith.constant 0.000000e+00 : f32
      %16 = vector.broadcast %cst_13 : f32 to vector<8x128xf32>
      %17 = arith.subf %16, %15 : vector<8x128xf32>
      %18 = math.exp %17 : vector<8x128xf32>
      %19 = math.log1p %18 : vector<8x128xf32>
      %20 = arith.addf %14, %19 : vector<8x128xf32>
      %c0_14 = arith.constant 0 : index
      %c0_15 = arith.constant 0 : index
      %21 = vector.load %arg6[%c0_14, %c0_15] : memref<8x128xf32, #tpu.memory_space<vmem>>, vector<8x128xf32>
      tpu.vector_store %arg6[%c0_14, %c0_15], %20 {strides = array<i32>} : memref<8x128xf32, #tpu.memory_space<vmem>>, vector<8x128xf32>,
    } else {
    }
    return
  }
  func.func @transform_0(%arg0: i32, %arg1: i32, %arg2: i32) -> (i32, i32) {
    %c0_i32 = arith.constant 0 : i32
    return %arg0, %arg2 : i32, i32
  }
  func.func @transform_1(%arg0: i32, %arg1: i32, %arg2: i32) -> (i32, i32) {
    %c0_i32 = arith.constant 0 : i32
    return %arg2, %arg1 : i32, i32
  }
  func.func @transform_2(%arg0: i32, %arg1: i32, %arg2: i32) -> (i32, i32) {
    %c0_i32 = arith.constant 0 : i32
    %c0_i32_0 = arith.constant 0 : i32
    return %c0_i32, %arg1 : i32, i32
  }
  func.func @transform_3(%arg0: i32, %arg1: i32, %arg2: i32) -> (i32, i32) {
    %c0_i32 = arith.constant 0 : i32
    return %arg0, %arg1 : i32, i32
  }
}

</mosaic_0001>

<llo_original>
// kernel: hidden_layer.1
$region0: #{hidden_layer.1}
  #allocation0 [shape = 'u32[]', space=smem, size = 0x4, offset = 0x4, fixed_abs, tag = 'smem constant byte address 0x4 - core index']
  #allocation1 [shape = 'u32[72,128]{1,0:T(1,128)}', space=vmem, size = 0x9000, scoped, tag = 'internal scratch']
  #allocation2 [shape = 'f32[8,128]{1,0:T(8,128)}', space=vmem, size = 0x1000, scoped, tag = 'scratch operand']
  %s0 = inlined_call_operand.vmem [shape: bf16[16,128], index: 0, kind: input, shape index: {}]
  %s1 = inlined_call_operand.hbm [shape: bf16[128,128], index: 1, kind: input, shape index: {}]
  %s2 = inlined_call_operand.vmem [shape: f32[1,128], index: 2, kind: input, shape index: {}]
  %s3 = inlined_call_operand.hbm [shape: f32[16,64], index: 3, kind: output, shape index: {}]
  %s4 = sld [smem:[#allocation0]]
  $region57: #{hidden_layer.1} parent=0
    _
  %s6 = ssub.s32 1, %s4
  %s7 = scalar_select 0, %s6, %s4
  $region1: #{hidden_layer.1} parent=0
    #allocation3 [shape = 'u8[32768]{0}', space=vmem, size = 0x8000, scoped, tag = 'input window, operand 1, single buffered']
    #allocation4 [shape = 's32[2]{0}', space=sflag, size = 0x8, scoped, tag = 'scoped memory for hidden_layer.1']
    #allocation5 [shape = 's32[2]{0}', space=sflag, size = 0x8, scoped, tag = 'scoped memory for hidden_layer.1']
    #allocation6 [shape = 'u8[8192]{0}', space=vmem, size = 0x2000, scoped, tag = 'output window, operand 0']
    %8 = vsyncpa [#allocation4], 0
    %9 = vsyncpa [#allocation5], 0
    %s10 = scalar_lea.sflag [#allocation5], 1
    %11 = vsyncpa %s10, 0
    loop: start=0, step=1, limit=4
    $region2: #{hidden_layer.1} parent=1 // loop_pre_header
      _
    $region3: #{hidden_layer.1} parent=1 // loop_header
      %s13 = sphi 0, %s17
      %p14 = scmp.ge.s32.totalorder %s13, 4
      %s20 = sphi 0, %s39
      %s21 = sphi 0, %s35
      %s22 = sphi 0, %s31
      %s23 = sphi 0, %s20
      %s24 = sphi 0, %s21
      %s25 = sphi 0, %s22
      %s26 = sphi 0, %s23
      %s27 = sphi 0, %s24
      %s28 = sphi 0, %s25
      %s44 = sphi 0, %s46
      %s47 = sphi 0, %s44
      %s48 = sphi 0, %s47
      %s64 = sphi 0, %s48
      %s72 = sphi 0, %s74
      %s75 = sphi 0, %s72
      %s76 = sphi 0, %s75
      %s92 = sphi 0, %s76
      %s98 = sphi 0, %s100
      %s101 = sphi 0, %s98
      %s102 = sphi 0, %s101
      %s118 = sphi 0, %s102
      %s126 = sphi 0, %s128
      %s129 = sphi 0, %s126
      %s130 = sphi 0, %s129
      %s146 = sphi 0, %s130
    $region4: #{hidden_layer.1} parent=1 // loop_header_branch
      %16 = sbr.rel (%p14) target = $region8
    $region5: #{hidden_layer.1} parent=1 // loop_body
      %s18 = ssub.s32 %s13, 1
      %s19 = ssub.s32 %s13, 2
      %s29 = sadd.s32 1, %s22
      %p30 = scmp.ge.s32.totalorder %s29, 1
      %s31 = scalar_select %p30, 0, %s29
      %s32 = sadd.s32 1, %s21
      %s33 = scalar_select %p30, %s32, %s21
      %p34 = scmp.ge.s32.totalorder %s33, 1
      %s35 = scalar_select %p34, 0, %s33
      %s36 = sadd.s32 1, %s20
      %s37 = scalar_select %p34, %s36, %s20
      %p38 = scmp.ge.s32.totalorder %s37, 2
      %s39 = scalar_select %p38, 0, %s37
      %s40 = ssub.s32 %s20, %s39
      %s41 = ssub.s32 %s22, %s31
      %s42 = sor.u32 %s40, %s41
      %p43 = scmp.eq.s32.totalorder %s42, 0
      %s45 = sadd.s32 %s44, 1
      %s46 = scalar_select %p43, %s44, %s45
      %p49 = pneg %p43
      %p50 = scmp.eq.s32.totalorder %s13, 1
      %p51 = por %p49, %p50
      %p52 = scmp.ne.s32.totalorder %s44, %s47
      %p53 = scmp.eq.s32.totalorder %s13, 0
      %p54 = por %p52, %p53
      %p55 = scmp.ne.s32.totalorder %s44, %s47
      %p56 = scmp.eq.s32.totalorder %s18, 1
      %p57 = por %p55, %p56
      %p58 = scmp.ne.s32.totalorder %s47, %s48
      %p59 = scmp.eq.s32.totalorder %s18, 0
      %p60 = por %p58, %p59
      %p61 = scmp.ne.s32.totalorder %s47, %s48
      %p62 = scmp.eq.s32.totalorder %s19, 1
      %p63 = por %p61, %p62
      %p65 = scmp.ne.s32.totalorder %s48, %s64
      %p66 = scmp.eq.s32.totalorder %s19, 0
      %p67 = por %p65, %p66
      %s68 = ssub.s32 %s22, %s31
      %s69 = ssub.s32 %s21, %s35
      %s70 = sor.u32 %s68, %s69
      %p71 = scmp.eq.s32.totalorder %s70, 0
      %s73 = sadd.s32 %s72, 1
      %s74 = scalar_select %p71, %s72, %s73
      %p77 = pneg %p71
      %p78 = scmp.eq.s32.totalorder %s13, 1
      %p79 = por %p77, %p78
      %p80 = scmp.ne.s32.totalorder %s72, %s75
      %p81 = scmp.eq.s32.totalorder %s13, 0
      %p82 = por %p80, %p81
      %p83 = scmp.ne.s32.totalorder %s72, %s75
      %p84 = scmp.eq.s32.totalorder %s18, 1
      %p85 = por %p83, %p84
      %p86 = scmp.ne.s32.totalorder %s75, %s76
      %p87 = scmp.eq.s32.totalorder %s18, 0
      %p88 = por %p86, %p87
      %p89 = scmp.ne.s32.totalorder %s75, %s76
      %p90 = scmp.eq.s32.totalorder %s19, 1
      %p91 = por %p89, %p90
      %p93 = scmp.ne.s32.totalorder %s76, %s92
      %p94 = scmp.eq.s32.totalorder %s19, 0
      %p95 = por %p93, %p94
      %s96 = ssub.s32 %s21, %s35
      %p97 = scmp.eq.s32.totalorder %s96, 0
      %s99 = sadd.s32 %s98, 1
      %s100 = scalar_select %p97, %s98, %s99
      %p103 = pneg %p97
      %p104 = scmp.eq.s32.totalorder %s13, 1
      %p105 = por %p103, %p104
      %p106 = scmp.ne.s32.totalorder %s98, %s101
      %p107 = scmp.eq.s32.totalorder %s13, 0
      %p108 = por %p106, %p107
      %p109 = scmp.ne.s32.totalorder %s98, %s101
      %p110 = scmp.eq.s32.totalorder %s18, 1
      %p111 = por %p109, %p110
      %p112 = scmp.ne.s32.totalorder %s101, %s102
      %p113 = scmp.eq.s32.totalorder %s18, 0
      %p114 = por %p112, %p113
      %p115 = scmp.ne.s32.totalorder %s101, %s102
      %p116 = scmp.eq.s32.totalorder %s19, 1
      %p117 = por %p115, %p116
      %p119 = scmp.ne.s32.totalorder %s102, %s118
      %p120 = scmp.eq.s32.totalorder %s19, 0
      %p121 = por %p119, %p120
      %s122 = ssub.s32 %s20, %s39
      %s123 = ssub.s32 %s21, %s35
      %s124 = sor.u32 %s122, %s123
      %p125 = scmp.eq.s32.totalorder %s124, 0
      %s127 = sadd.s32 %s126, 1
      %s128 = scalar_select %p125, %s126, %s127
      %p131 = pneg %p125
      %p132 = scmp.eq.s32.totalorder %s13, 1
      %p133 = por %p131, %p132
      %p134 = scmp.ne.s32.totalorder %s126, %s129
      %p135 = scmp.eq.s32.totalorder %s13, 0
      %p136 = por %p134, %p135
      %p137 = scmp.ne.s32.totalorder %s126, %s129
      %p138 = scmp.eq.s32.totalorder %s18, 1
      %p139 = por %p137, %p138
      %p140 = scmp.ne.s32.totalorder %s129, %s130
      %p141 = scmp.eq.s32.totalorder %s18, 0
      %p142 = por %p140, %p141
      %p143 = scmp.ne.s32.totalorder %s129, %s130
      %p144 = scmp.eq.s32.totalorder %s19, 1
      %p145 = por %p143, %p144
      %p147 = scmp.ne.s32.totalorder %s130, %s146
      %p148 = scmp.eq.s32.totalorder %s19, 0
      %p149 = por %p147, %p148
      %p150 = scmp.le.s32.totalorder 1, %s13
      %p151 = scmp.lt.s32.totalorder %s13, 3
      %p152 = pnand %p150, %p151
      %p153 = pneg %p152
      // Predicated region
      $region9: #{hidden_layer.1} parent=5 // pred_check
        _
      $region10: #{hidden_layer.1} parent=5 // pred_check_branch
        %155 = sbr.rel (%p152) target = $region12
      $region11: #{hidden_layer.1} parent=5 // pred_region
        %s156 = ssub.s32 %s13, 1
        // Predicated region
        $region13: #{hidden_layer.1} parent=11 // pred_check
          %p157 = pneg %p88
        $region14: #{hidden_layer.1} parent=11 // pred_check_branch
          %159 = sbr.rel (%p157) target = $region16
        $region15: #{hidden_layer.1} parent=11 // pred_region
          %s160 = smul.u32 16, %s25
          %162 = vsyncadd [#allocation4], 0
          %s163 = sadd.s32 %s24, %s160
          %s164 = smul.addr %s163, 4
          %s165 = scalar_lea.hbm %s1, %s164
          %s166 = sshll.u32 %s165, 4
          %s167 = int_to_ptr.hbm [resolvable:$true] %s166
          %s168 = sshll.u32 [#allocation3], 4
          %s169 = int_to_ptr.vmem [resolvable:$true] %s168
          %174 = dma.hbm_to_vmem [thread:$0]  %s167, 1024, %s169, [#allocation4], 64, 64, 4
        $region16: #{hidden_layer.1} parent=11 // pred_fallthru
          _
        // Predicated region
        $region17: #{hidden_layer.1} parent=11 // pred_check
          %p175 = pneg %p114
        $region18: #{hidden_layer.1} parent=11 // pred_check_branch
          %177 = sbr.rel (%p175) target = $region20
        $region19: #{hidden_layer.1} parent=11 // pred_region
          %p178 = scmp.lt.s32.totalorder %s24, 0
          %s179 = scalar_select %p178, %s24, 0
          %s180 = scalar_lea.vmem %s2, %s179
        $region20: #{hidden_layer.1} parent=11 // pred_fallthru
          _
      $region12: #{hidden_layer.1} parent=5 // pred_fallthru
        _
      %p181 = scmp.lt.s32.totalorder %s13, 2
      // Predicated region
      $region21: #{hidden_layer.1} parent=5 // pred_check
        %p182 = pneg %p181
      $region22: #{hidden_layer.1} parent=5 // pred_check_branch
        %184 = sbr.rel (%p182) target = $region24
      $region23: #{hidden_layer.1} parent=5 // pred_region
        // Predicated region
        $region25: #{hidden_layer.1} parent=23 // pred_check
          %p185 = pneg %p54
        $region26: #{hidden_layer.1} parent=23 // pred_check_branch
          %187 = sbr.rel (%p185) target = $region28
        $region27: #{hidden_layer.1} parent=23 // pred_region
          %p188 = scmp.lt.s32.totalorder %s20, 1
          %s189 = scalar_select %p188, %s20, 1
          %p190 = scmp.lt.s32.totalorder %s22, 0
          %s191 = scalar_select %p190, %s22, 0
          %s192 = sadd.s32 %s191, %s189
          %s193 = smul.addr %s192, 4
          %s194 = scalar_lea.vmem %s0, %s193
        $region28: #{hidden_layer.1} parent=23 // pred_fallthru
          _
      $region24: #{hidden_layer.1} parent=5 // pred_fallthru
        _
      %p195 = scmp.le.s32.totalorder 1, %s13
      %p196 = scmp.lt.s32.totalorder %s13, 3
      %p197 = pnand %p195, %p196
      %p198 = pneg %p197
      // Predicated region
      $region29: #{hidden_layer.1} parent=5 // pred_check
        _
      $region30: #{hidden_layer.1} parent=5 // pred_check_branch
        %200 = sbr.rel (%p197) target = $region32
      $region31: #{hidden_layer.1} parent=5 // pred_region
        %s201 = ssub.s32 %s13, 1
        // Predicated region
        $region33: #{hidden_layer.1} parent=31 // pred_check
          %p202 = pneg %p88
        $region34: #{hidden_layer.1} parent=31 // pred_check_branch
          %204 = sbr.rel (%p202) target = $region36
        $region35: #{hidden_layer.1} parent=31 // pred_region
          %206 = dma.done [#allocation4], 1024
        $region36: #{hidden_layer.1} parent=31 // pred_fallthru
          _
        %p207 = scmp.lt.s32.totalorder %s23, 1
        %s208 = scalar_select %p207, %s23, 1
        %p209 = scmp.lt.s32.totalorder %s25, 0
        %s210 = scalar_select %p209, %s25, 0
        %s211 = sadd.s32 %s210, %s208
        %s212 = smul.addr %s211, 4
        %s213 = scalar_lea.vmem %s0, %s212
        %p214 = pneg %p60
        %p215 = pneg %p57
        %p216 = pneg %p88
        %p217 = pneg %p85
        %p218 = scmp.lt.s32.totalorder %s24, 0
        %s219 = scalar_select %p218, %s24, 0
        %s220 = scalar_lea.vmem %s2, %s219
        %p221 = pneg %p114
        %p222 = pneg %p111
        %p223 = pneg %p142
        %p224 = pneg %p139
        %s225 = sand.u32 %s129, 1
        %s226 = scalar_lea.sflag [#allocation5], %s225
        %s227 = sand.u32 %s129, 1
        %s228 = smul.addr %s227, 8
        %s229 = scalar_lea.vmem [#allocation6], %s228
        %p230 = scmp.lt.s32.totalorder %s23, 1
        %s231 = scalar_select %p230, %s23, 1
        %p232 = scmp.lt.s32.totalorder %s25, 0
        %s233 = scalar_select %p232, %s25, 0
        %s234 = sadd.s32 %s233, %s231
        %s235 = smul.addr %s234, 4
        %s236 = scalar_lea.vmem %s0, %s235
        %s237 = smul.u32 16, %s25
        %p238 = scmp.lt.s32.totalorder %s24, 0
        %s239 = scalar_select %p238, %s24, 0
        %s240 = scalar_lea.vmem %s2, %s239
        %p241 = scmp.eq.s32.totalorder %s25, 0
        // Predicated region
        $region37: #{hidden_layer.1} parent=31 // pred_check
          %p242 = pneg %p241
        $region38: #{hidden_layer.1} parent=31 // pred_check_branch
          %244 = sbr.rel (%p242) target = $region40
        $region39: #{hidden_layer.1} parent=31 // pred_region
          %v245 = vld [vmem:[%s240] sm:$0x1]
          %v247 = vperm.slane %v245, 0
          %249 = vst [vmem:[#allocation2] sm:$0xff] %v247
        $region40: #{hidden_layer.1} parent=31 // pred_fallthru
          _
        %v250 = vld [vmem:[#allocation2] sm:$0xff]
        %v251 = vld [vmem:[%s236] sm:$0xf]
        %v252 = vld [vmem:[#allocation3] sm:$0xf]
        %v253 = vld [vmem:[#allocation3 + $0x4] sm:$0xf]
        %v254 = vld [vmem:[#allocation3 + $0x8] sm:$0xf]
        %v255 = vld [vmem:[#allocation3 + $0xc] sm:$0xf]
        %v256 = vld [vmem:[#allocation3 + $0x10] sm:$0xf]
        %v257 = vld [vmem:[#allocation3 + $0x14] sm:$0xf]
        %v258 = vld [vmem:[#allocation3 + $0x18] sm:$0xf]
        %v259 = vld [vmem:[#allocation3 + $0x1c] sm:$0xf]
        %v260 = vld [vmem:[#allocation3 + $0x20] sm:$0xf]
        %v261 = vld [vmem:[#allocation3 + $0x24] sm:$0xf]
        %v262 = vld [vmem:[#allocation3 + $0x28] sm:$0xf]
        %v263 = vld [vmem:[#allocation3 + $0x2c] sm:$0xf]
        %v264 = vld [vmem:[#allocation3 + $0x30] sm:$0xf]
        %v265 = vld [vmem:[#allocation3 + $0x34] sm:$0xf]
        %v266 = vld [vmem:[#allocation3 + $0x38] sm:$0xf]
        %v267 = vld [vmem:[#allocation3 + $0x3c] sm:$0xf]
        %v284 = vunpack.c.l.b16 %v252
        %v285 = vunpack.c.l.b16 %v253
        %v286 = vunpack.c.l.b16 %v254
        %v287 = vunpack.c.l.b16 %v255
        %v288 = vunpack.c.l.b16 %v256
        %v289 = vunpack.c.l.b16 %v257
        %v290 = vunpack.c.l.b16 %v258
        %v291 = vunpack.c.l.b16 %v259
        %v292 = vunpack.c.l.b16 %v260
        %v293 = vunpack.c.l.b16 %v261
        %v294 = vunpack.c.l.b16 %v262
        %v295 = vunpack.c.l.b16 %v263
        %v296 = vunpack.c.l.b16 %v264
        %v297 = vunpack.c.l.b16 %v265
        %v298 = vunpack.c.l.b16 %v266
        %v299 = vunpack.c.l.b16 %v267
        %v300 = vpack.c.b16 %v285, %v284
        %v301 = vpack.c.b16 %v287, %v286
        %v302 = vpack.c.b16 %v289, %v288
        %v303 = vpack.c.b16 %v291, %v290
        %v304 = vpack.c.b16 %v293, %v292
        %v305 = vpack.c.b16 %v295, %v294
        %v306 = vpack.c.b16 %v297, %v296
        %v307 = vpack.c.b16 %v299, %v298
        %316 = vmatpush.bf16.msra.mxu0 %v307
        %317 = vmatpush.bf16.msra.mxu0 %v306
        %318 = vmatpush.bf16.msra.mxu0 %v305
        %319 = vmatpush.bf16.msra.mxu0 %v304
        %320 = vmatpush.bf16.msra.mxu0 %v303
        %321 = vmatpush.bf16.msra.mxu0 %v302
        %322 = vmatpush.bf16.msra.mxu0 %v301
        %323 = vmatpush.bf16.msra.mxu0 %v300
        %324 = vmatmul.bf16.gmra.mxu0 %v251
        %v325 = vpop.f32.mrf.mxu0
        %v326 = vadd.f32 0.0, %v325
        %v327 = vpop.f32.mrf.mxu0
        %328 = vdwg.mxu0
        %v329 = vadd.f32 %v250, %v326
        %330 = vst [vmem:[#allocation2] sm:$0xff] %v329
        // Predicated region
        $region41: #{hidden_layer.1} parent=31 // pred_check
          %p331 = pneg %p241
        $region42: #{hidden_layer.1} parent=31 // pred_check_branch
          %333 = sbr.rel (%p331) target = $region44
        $region43: #{hidden_layer.1} parent=31 // pred_region
          %v334 = vld [vmem:[#allocation2] sm:$0xff]
          %v335 = vmax.f32 %v334, 0.0
          %v336 = vand.u32 2147483647, %v334
          %v337 = vsub.f32 0.0, %v336
          %v338 = vmul.f32 %v337, 1.442695
          %v339 = vpow.pop %v338
          %v340 = vadd.f32 %v339, 1.0
          %v341 = vlog2.pop %v340
          %v342 = vmul.f32 %v341, 0.6931472
          %v343 = vmul.f32 -0.5, %v339
          %v344 = vadd.f32 %v343, 1.0
          %v345 = vmul.f32 %v344, %v339
          %v346 = vand.u32 2147483647, %v339
          %vm347 = vcmp.lt.f32.partialorder %v346, 0.0004427343
          %v348 = vsel %vm347, %v345, %v342
          %v349 = vadd.f32 %v335, %v348
          %350 = vst [vmem:[%s229] sm:$0xff] %v349
        $region44: #{hidden_layer.1} parent=31 // pred_fallthru
          _
        %s351 = sand.u32 %s129, 1
        %s352 = scalar_lea.sflag [#allocation5], %s351
        %s353 = sand.u32 %s129, 1
        %s354 = smul.addr %s353, 8
        %s355 = scalar_lea.vmem [#allocation6], %s354
        // Predicated region
        $region45: #{hidden_layer.1} parent=31 // pred_check
          %p356 = pneg %p139
        $region46: #{hidden_layer.1} parent=31 // pred_check_branch
          %358 = sbr.rel (%p356) target = $region48
        $region47: #{hidden_layer.1} parent=31 // pred_region
          %360 = vsyncadd %s352, 0
          %s361 = sadd.s32 %s24, %s23
          %s362 = smul.addr %s361, 8
          %s363 = scalar_lea.hbm %s3, %s362
          %s365 = sshll.u32 %s355, 4
          %s366 = int_to_ptr.vmem [resolvable:$true] %s365
          %s367 = sshll.u32 %s363, 4
          %s368 = int_to_ptr.hbm [resolvable:$true] %s367
          %370 = dma.vmem_to_hbm [thread:$0]  %s366, 128, %s368, %s352
        $region48: #{hidden_layer.1} parent=31 // pred_fallthru
          _
      $region32: #{hidden_layer.1} parent=5 // pred_fallthru
        _
      %p371 = scmp.le.s32.totalorder 2, %s13
      // Predicated region
      $region49: #{hidden_layer.1} parent=5 // pred_check
        %p372 = pneg %p371
      $region50: #{hidden_layer.1} parent=5 // pred_check_branch
        %374 = sbr.rel (%p372) target = $region52
      $region51: #{hidden_layer.1} parent=5 // pred_region
        %s375 = ssub.s32 %s13, 2
        // Predicated region
        $region53: #{hidden_layer.1} parent=51 // pred_check
          %p376 = pneg %p145
        $region54: #{hidden_layer.1} parent=51 // pred_check_branch
          %378 = sbr.rel (%p376) target = $region56
        $region55: #{hidden_layer.1} parent=51 // pred_region
          %s379 = sand.u32 %s130, 1
          %s380 = scalar_lea.sflag [#allocation5], %s379
          %s381 = sand.u32 %s130, 1
          %s382 = smul.addr %s381, 8
          %s383 = scalar_lea.vmem [#allocation6], %s382
          %385 = dma.done %s380, 128
        $region56: #{hidden_layer.1} parent=51 // pred_fallthru
          _
      $region52: #{hidden_layer.1} parent=5 // pred_fallthru
        _
    $region6: #{hidden_layer.1} parent=1 // loop_footer
      %s17 = sadd.s32 1, %s13
    $region7: #{hidden_layer.1} parent=1 // loop_footer_branch
      %12 = sbr.rel target = $region3
    $region8: #{hidden_layer.1} parent=1 // loop_exit
      _
    %386 = vsyncpa [#allocation4], 1
    %s387 = scalar_lea.sflag [#allocation4], 1
    %388 = vsyncpa %s387, 1
    %389 = vsyncpa [#allocation5], 1
    %s390 = scalar_lea.sflag [#allocation5], 1
    %391 = vsyncpa %s390, 1

</llo_original>
